<compile_context>
chip_gen: v7x
topology: tpu7x:2x2x1
jax: 0.10.0
libtpu: 0.0.40
codegen_flags: <defaults>
</compile_context>

<pallas_src>
import jax
import jax.numpy as jnp
from jax.experimental import pallas as pl
from jax.experimental.pallas import tpu as pltpu


# ---------------------------------------------------------------------------
# Kernels
# ---------------------------------------------------------------------------
def ca_fused_kernel(x_ref, w1t_ref, b1_ref, w2t_ref, b2_ref, o_ref):
    # x_ref: (bn, C, HWp)   w1t: (C, mid) pre-transposed, pre-scaled by 1/HW
    # b1: (1, mid)          w2t: (mid, C)  b2: (1, C)
    x = x_ref[...]                                   # keep native dtype
    # Global average pool: spatial sum with f32 accumulation (1/HW folded into
    # w1t; padded lanes are zero so they do not perturb the sum).
    y = jnp.sum(x, axis=2, dtype=jnp.float32)        # (bn, C)
    # 1x1 conv C -> mid (+bias, ReLU); weights pre-transposed host-side.
    y1 = jnp.dot(y, w1t_ref[...], preferred_element_type=jnp.float32) + b1_ref[...]
    y1 = jnp.maximum(y1, 0.0)                        # (bn, mid)
    # 1x1 conv mid -> C (+bias, Sigmoid)
    y2 = jnp.dot(y1, w2t_ref[...], preferred_element_type=jnp.float32) + b2_ref[...]
    s = jax.nn.sigmoid(y2).astype(x.dtype)           # (bn, C)
    # Channel-wise rescale (cast the tiny scale down, not x up).
    o_ref[...] = (x * s[:, :, None]).astype(o_ref.dtype)


def ca_gap_fc_kernel(x_ref, w1t_ref, b1_ref, w2t_ref, b2_ref, s_ref, acc_ref):
    # Split path, pass A: HW-chunked spatial sum + the two FCs -> s = (bn, 1, C).
    h = pl.program_id(1)

    @pl.when(h == 0)
    def _():
        acc_ref[...] = jnp.zeros_like(acc_ref)

    acc_ref[...] += jnp.sum(x_ref[...], axis=2, dtype=jnp.float32)

    @pl.when(h == pl.num_programs(1) - 1)
    def _():
        y = acc_ref[...]                                                # (bn, C)
        y1 = jnp.dot(y, w1t_ref[...], preferred_element_type=jnp.float32) + b1_ref[...]
        y1 = jnp.maximum(y1, 0.0)
        y2 = jnp.dot(y1, w2t_ref[...], preferred_element_type=jnp.float32) + b2_ref[...]
        s_ref[...] = jax.nn.sigmoid(y2)[:, None, :]                     # (bn, 1, C)


def ca_scale_kernel(x_ref, s_ref, o_ref):
    # Split path, pass B: pure streaming rescale, tiled over (N, HW-chunks).
    x = x_ref[...]
    s = s_ref[...][:, 0, :].astype(x.dtype)          # (bn, C)
    o_ref[...] = (x * s[:, :, None]).astype(o_ref.dtype)


# ---------------------------------------------------------------------------
# Generation-aware tiling helpers
# ---------------------------------------------------------------------------
def _tpu_caps():
    """Returns (device_kind, vmem_capacity_bytes, num_tensorcores, target block bytes)."""
    kind = ""
    try:
        kind = jax.devices()[0].device_kind.lower()
    except Exception:
        pass
    num_tc = 2 if "v7" in kind else 1
    vmem_cap = (64 << 20) if "v7" in kind else (128 << 20)
    try:
        vmem_cap = int(pltpu.get_tpu_info().vmem_capacity_bytes)
    except Exception:
        pass
    if "v6" in kind:
        target = 16 << 20   # 128 MiB VMEM: bigger blocks amortize the ~0.35 us/step cost
    elif "v7" in kind:
        target = 6 << 20    # 64 MiB VMEM/TC: keep 4x block + slack well inside budget
    else:
        target = 4 << 20    # v5e & unknown: 4 MiB is already ample for ~820 GB/s HBM
    return kind, vmem_cap, num_tc, target


def _pick_batch_tile(N, per_img_bytes, target_bytes, num_tc):
    """Largest divisor bn of N whose (bn, C, HWp) block is <= target_bytes.
    On multi-TensorCore chips keep >= 2 grid steps per core when possible (so
    each core still double-buffers) and prefer an even step count."""
    bn = int(max(1, min(N, target_bytes // max(per_img_bytes, 1))))
    while N % bn:
        bn -= 1
    if num_tc > 1 and N >= num_tc:
        want_steps = 2 * num_tc if N >= 2 * num_tc else num_tc
        limit = max(1, min(bn, N // want_steps))
        divisors = [d for d in range(1, limit + 1) if N % d == 0]
        even = [d for d in divisors if (N // d) % 2 == 0]
        if even:
            bn = max(even)
        elif divisors:
            bn = max(divisors)
    return int(bn)


def _pick_hw_chunk(HWp, row128_bytes, target_bytes):
    """Largest multiple-of-128 divisor of HWp whose block fits target_bytes.
    row128_bytes = bytes of one (bn, C, 128) slab."""
    k = HWp // 128
    best = 128
    for d in range(1, k + 1):
        if k % d == 0 and d * row128_bytes <= target_bytes:
            best = d * 128
    return int(best)


def _vmem_limit(block_bytes, n_buffers, vmem_cap):
    """Footprint-derived scoped-VMEM limit: live blocks + weights + slack."""
    limit = n_buffers * block_bytes + (3 << 20)
    limit = max(limit, 8 << 20)                       # floor for compiler scratch
    limit = min(limit, max(vmem_cap - (8 << 20), 16 << 20))
    return int(limit)


# ---------------------------------------------------------------------------
# Wrapper
# ---------------------------------------------------------------------------
@jax.jit
def ca_layer(x, w1, b1, w2, b2):
    """CALayer forward. x: (N, C, H, W). w1: (mid, C), b1: (mid,), w2: (C, mid), b2: (C,).
    Returns a fresh buffer (x is not donated, so no in-place aliasing)."""
    N, C, H, W = x.shape
    HW = H * W
    mid = w1.shape[0]
    itemsize = x.dtype.itemsize

    _, vmem_cap, num_tc, target_bytes = _tpu_caps()

    # Lane-dense spatial axis: pad H*W to a multiple of 128 so output stores are
    # unmasked; zeros in the pad don't disturb the GAP sum and are sliced off.
    # No-op when HW is already 128-aligned.
    HWp = ((HW + 127) // 128) * 128
    x_flat = x.reshape(N, C, HW)
    if HWp != HW:
        x_flat = jnp.pad(x_flat, ((0, 0), (0, 0), (0, HWp - HW)))

    # Host-side weight prep: transpose once (no per-step XLU transpose in-kernel)
    # and fold the GAP's 1/HW (true HW, not padded) into w1.
    w1t = (w1.T / HW).astype(jnp.float32)            # (C, mid)
    w2t = w2.T.astype(jnp.float32)                   # (mid, C)
    b1_2d = b1.reshape(1, mid).astype(jnp.float32)
    b2_2d = b2.reshape(1, C).astype(jnp.float32)

    per_img_bytes = C * HWp * itemsize
    # Fused single pass only when a whole image's (C, HWp) block can be
    # double-buffered both ways inside VMEM; otherwise use the two-pass split.
    fused_ok = 4 * per_img_bytes + (8 << 20) <= vmem_cap

    if fused_ok:
        bn = _pick_batch_tile(N, per_img_bytes, target_bytes, num_tc)
        block_bytes = bn * per_img_bytes
        cost = pl.CostEstimate(
            flops=2 * N * C * HW + 4 * N * C * mid,
            transcendentals=N * C,
            bytes_accessed=2 * N * C * HWp * itemsize + (2 * C * mid + C + mid) * 4,
        )
        out = pl.pallas_call(
            ca_fused_kernel,
            out_shape=jax.ShapeDtypeStruct((N, C, HWp), x.dtype),
            grid_spec=pltpu.PrefetchScalarGridSpec(
                num_scalar_prefetch=0,
                grid=(N // bn,),
                in_specs=[
                    pl.BlockSpec((bn, C, HWp), lambda n: (n, 0, 0)),
                    pl.BlockSpec((C, mid), lambda n: (0, 0)),
                    pl.BlockSpec((1, mid), lambda n: (0, 0)),
                    pl.BlockSpec((mid, C), lambda n: (0, 0)),
                    pl.BlockSpec((1, C), lambda n: (0, 0)),
                ],
                out_specs=pl.BlockSpec((bn, C, HWp), lambda n: (n, 0, 0)),
            ),
            compiler_params=pltpu.CompilerParams(
                dimension_semantics=("parallel",),
                vmem_limit_bytes=_vmem_limit(block_bytes, 4, vmem_cap),
            ),
            cost_estimate=cost,
        )(x_flat, w1t, b1_2d, w2t, b2_2d)
    else:
        # Split path: one extra read of x, but per-step blocks stay bounded no
        # matter how large C*H*W is.
        # TODO(synk): extreme C (C*128*itemsize > the per-block budget) would
        # additionally need channel tiling in this path.
        bn = 1
        row128_bytes = bn * C * 128 * itemsize
        chunk = _pick_hw_chunk(HWp, row128_bytes, target_bytes)
        block_bytes = bn * C * chunk * itemsize

        s = pl.pallas_call(
            ca_gap_fc_kernel,
            out_shape=jax.ShapeDtypeStruct((N, 1, C), jnp.float32),
            grid_spec=pltpu.PrefetchScalarGridSpec(
                num_scalar_prefetch=0,
                grid=(N // bn, HWp // chunk),
                in_specs=[
                    pl.BlockSpec((bn, C, chunk), lambda n, h: (n, 0, h)),
                    pl.BlockSpec((C, mid), lambda n, h: (0, 0)),
                    pl.BlockSpec((1, mid), lambda n, h: (0, 0)),
                    pl.BlockSpec((mid, C), lambda n, h: (0, 0)),
                    pl.BlockSpec((1, C), lambda n, h: (0, 0)),
                ],
                out_specs=pl.BlockSpec((bn, 1, C), lambda n, h: (n, 0, 0)),
                scratch_shapes=[pltpu.VMEM((bn, C), jnp.float32)],
            ),
            compiler_params=pltpu.CompilerParams(
                dimension_semantics=("parallel", "arbitrary"),
                vmem_limit_bytes=_vmem_limit(block_bytes, 3, vmem_cap),
            ),
        )(x_flat, w1t, b1_2d, w2t, b2_2d)

        out = pl.pallas_call(
            ca_scale_kernel,
            out_shape=jax.ShapeDtypeStruct((N, C, HWp), x.dtype),
            grid_spec=pltpu.PrefetchScalarGridSpec(
                num_scalar_prefetch=0,
                grid=(N // bn, HWp // chunk),
                in_specs=[
                    pl.BlockSpec((bn, C, chunk), lambda n, h: (n, 0, h)),
                    pl.BlockSpec((bn, 1, C), lambda n, h: (n, 0, 0)),
                ],
                out_specs=pl.BlockSpec((bn, C, chunk), lambda n, h: (n, 0, h)),
            ),
            compiler_params=pltpu.CompilerParams(
                dimension_semantics=("parallel", "parallel"),
                vmem_limit_bytes=_vmem_limit(block_bytes, 4, vmem_cap),
            ),
        )(x_flat, s)

    if HWp != HW:
        out = out[:, :, :HW]
    return out.reshape(N, C, H, W)


def reference(x, w1, b1, w2, b2):
    # Pure-JAX reference of the PyTorch forward.
    y = jnp.mean(x, axis=(2, 3))                     # (N, C)
    y1 = jnp.maximum(y @ w1.T + b1, 0.0)             # (N, mid)
    y2 = jax.nn.sigmoid(y1 @ w2.T + b2)              # (N, C)
    return x * y2[:, :, None, None]


if __name__ == "__main__":
    # module config: channel=32, reduction=16 -> hidden = 2
    N, C, H, W = 2, 32, 16, 16
    reduction = 16
    mid = C // reduction

    key = jax.random.PRNGKey(0)
    kx, k1, k2, k3, k4 = jax.random.split(key, 5)
    x = jax.random.normal(kx, (N, C, H, W), dtype=jnp.float32)
    # deterministic parameter init (1x1 conv weights squeezed to 2-D)
    w1 = jax.random.normal(k1, (mid, C), dtype=jnp.float32) * 0.1   # Conv2d(C, mid, 1).weight
    b1 = jax.random.normal(k2, (mid,), dtype=jnp.float32) * 0.1     # Conv2d(C, mid, 1).bias
    w2 = jax.random.normal(k3, (C, mid), dtype=jnp.float32) * 0.1   # Conv2d(mid, C, 1).weight
    b2 = jax.random.normal(k4, (C,), dtype=jnp.float32) * 0.1       # Conv2d(mid, C, 1).bias

    out = jax.block_until_ready(ca_layer(x, w1, b1, w2, b2))
    ref = reference(x, w1, b1, w2, b2)
    assert out.shape == (N, C, H, W)
    assert jnp.allclose(out, ref, atol=1e-5, rtol=1e-5), "mismatch vs reference"
    print("KERNEL_OK")
</pallas_src>

<mosaic_0001>
module attributes {stable_mosaic.version = 11 : i64} {
  func.func @ca_fused_kernel(%arg0: i32, %arg1: memref<2x32x256xf32, #tpu.memory_space<vmem>>, %arg2: memref<32x2xf32, #tpu.memory_space<vmem>>, %arg3: memref<1x2xf32, #tpu.memory_space<vmem>>, %arg4: memref<2x32xf32, #tpu.memory_space<vmem>>, %arg5: memref<1x32xf32, #tpu.memory_space<vmem>>, %arg6: memref<2x32x256xf32, #tpu.memory_space<vmem>>) attributes {dimension_semantics = [#tpu.dimension_semantics<parallel>], iteration_bounds = array<i64: 1>, scalar_prefetch = 0 : i64, scratch_operands = 0 : i64, tpu.core_type = #tpu.core_type<tc>, window_params = [{transform_indices = @transform_0, window_bounds = array<i64: 2, 32, 256>}, {pipeline_mode = #tpu.pipeline_mode<synchronous>, transform_indices = @transform_1, window_bounds = array<i64: 32, 2>}, {pipeline_mode = #tpu.pipeline_mode<synchronous>, transform_indices = @transform_2, window_bounds = array<i64: 1, 2>}, {pipeline_mode = #tpu.pipeline_mode<synchronous>, transform_indices = @transform_3, window_bounds = array<i64: 2, 32>}, {pipeline_mode = #tpu.pipeline_mode<synchronous>, transform_indices = @transform_4, window_bounds = array<i64: 1, 32>}, {transform_indices = @transform_5, window_bounds = array<i64: 2, 32, 256>}]} {
    %c0 = arith.constant 0 : index
    %c0_0 = arith.constant 0 : index
    %c0_1 = arith.constant 0 : index
    %0 = vector.load %arg1[%c0, %c0_0, %c0_1] : memref<2x32x256xf32, #tpu.memory_space<vmem>>, vector<2x32x256xf32>
    %cst = arith.constant dense<0.000000e+00> : vector<2x32xf32>
    %1 = vector.multi_reduction <add>, %0, %cst [2] : vector<2x32x256xf32> to vector<2x32xf32>
    %c0_2 = arith.constant 0 : index
    %c0_3 = arith.constant 0 : index
    %2 = vector.load %arg2[%c0_2, %c0_3] : memref<32x2xf32, #tpu.memory_space<vmem>>, vector<32x2xf32>
    %cst_4 = arith.constant dense<0.000000e+00> : vector<2x2xf32>
    %3 = tpu.matmul %1, %2, %cst_4 {dimension_numbers = #tpu.dot_dimension_numbers<[1], [0], [0], [1], [0, 0, 1, 1], [], []>} : vector<2x32xf32>, vector<32x2xf32>, vector<2x2xf32> -> vector<2x2xf32>
    %c0_5 = arith.constant 0 : index
    %c0_6 = arith.constant 0 : index
    %4 = vector.load %arg3[%c0_5, %c0_6] : memref<1x2xf32, #tpu.memory_space<vmem>>, vector<1x2xf32>
    %5 = vector.broadcast %4 : vector<1x2xf32> to vector<2x2xf32>
    %6 = arith.addf %3, %5 : vector<2x2xf32>
    %cst_7 = arith.constant 0.000000e+00 : f32
    %7 = vector.broadcast %cst_7 : f32 to vector<2x2xf32>
    %8 = arith.maximumf %6, %7 : vector<2x2xf32>
    %c0_8 = arith.constant 0 : index
    %c0_9 = arith.constant 0 : index
    %9 = vector.load %arg4[%c0_8, %c0_9] : memref<2x32xf32, #tpu.memory_space<vmem>>, vector<2x32xf32>
    %cst_10 = arith.constant dense<0.000000e+00> : vector<2x32xf32>
    %10 = tpu.matmul %8, %9, %cst_10 {dimension_numbers = #tpu.dot_dimension_numbers<[1], [0], [0], [1], [0, 0, 1, 1], [], []>} : vector<2x2xf32>, vector<2x32xf32>, vector<2x32xf32> -> vector<2x32xf32>
    %c0_11 = arith.constant 0 : index
    %c0_12 = arith.constant 0 : index
    %11 = vector.load %arg5[%c0_11, %c0_12] : memref<1x32xf32, #tpu.memory_space<vmem>>, vector<1x32xf32>
    %12 = vector.broadcast %11 : vector<1x32xf32> to vector<2x32xf32>
    %13 = arith.addf %10, %12 : vector<2x32xf32>
    %14 = arith.negf %13 : vector<2x32xf32>
    %15 = math.exp %14 : vector<2x32xf32>
    %cst_13 = arith.constant 1.000000e+00 : f32
    %16 = vector.broadcast %cst_13 : f32 to vector<2x32xf32>
    %17 = arith.addf %16, %15 : vector<2x32xf32>
    %18 = arith.divf %16, %17 : vector<2x32xf32>
    %19 = vector.shape_cast %18 : vector<2x32xf32> to vector<2x32x1xf32>
    %20 = vector.broadcast %19 : vector<2x32x1xf32> to vector<2x32x256xf32>
    %21 = arith.mulf %0, %20 : vector<2x32x256xf32>
    %c0_14 = arith.constant 0 : index
    %c0_15 = arith.constant 0 : index
    %c0_16 = arith.constant 0 : index
    %22 = vector.load %arg6[%c0_14, %c0_15, %c0_16] : memref<2x32x256xf32, #tpu.memory_space<vmem>>, vector<2x32x256xf32>
    tpu.vector_store %arg6[%c0_14, %c0_15, %c0_16], %21 {strides = array<i32>} : memref<2x32x256xf32, #tpu.memory_space<vmem>>, vector<2x32x256xf32>,
    return
  }
  func.func @transform_0(%arg0: i32) -> (i32, i32, i32) {
    %c0_i32 = arith.constant 0 : i32
    %c0_i32_0 = arith.constant 0 : i32
    %c0_i32_1 = arith.constant 0 : i32
    return %arg0, %c0_i32, %c0_i32_0 : i32, i32, i32
  }
  func.func @transform_1(%arg0: i32) -> (i32, i32) {
    %c0_i32 = arith.constant 0 : i32
    %c0_i32_0 = arith.constant 0 : i32
    %c0_i32_1 = arith.constant 0 : i32
    return %c0_i32, %c0_i32_0 : i32, i32
  }
  func.func @transform_2(%arg0: i32) -> (i32, i32) {
    %c0_i32 = arith.constant 0 : i32
    %c0_i32_0 = arith.constant 0 : i32
    %c0_i32_1 = arith.constant 0 : i32
    return %c0_i32, %c0_i32_0 : i32, i32
  }
  func.func @transform_3(%arg0: i32) -> (i32, i32) {
    %c0_i32 = arith.constant 0 : i32
    %c0_i32_0 = arith.constant 0 : i32
    %c0_i32_1 = arith.constant 0 : i32
    return %c0_i32, %c0_i32_0 : i32, i32
  }
  func.func @transform_4(%arg0: i32) -> (i32, i32) {
    %c0_i32 = arith.constant 0 : i32
    %c0_i32_0 = arith.constant 0 : i32
    %c0_i32_1 = arith.constant 0 : i32
    return %c0_i32, %c0_i32_0 : i32, i32
  }
  func.func @transform_5(%arg0: i32) -> (i32, i32, i32) {
    %c0_i32 = arith.constant 0 : i32
    %c0_i32_0 = arith.constant 0 : i32
    %c0_i32_1 = arith.constant 0 : i32
    return %arg0, %c0_i32, %c0_i32_0 : i32, i32, i32
  }
}

</mosaic_0001>

<llo_original>
// kernel: ca_layer.1
$region0: #{ca_layer.1}
  #allocation0 [shape = 'u32[]', space=smem, size = 0x4, offset = 0x4, fixed_abs, tag = 'smem constant byte address 0x4 - core index']
  #allocation1 [shape = 'u32[144,128]{1,0:T(1,128)}', space=vmem, size = 0x12000, scoped, tag = 'internal scratch']
  %s0 = inlined_call_operand.vmem [shape: f32[2,32,256], index: 0, kind: input, shape index: {}]
  %s1 = inlined_call_operand.vmem [shape: f32[32,2], index: 1, kind: input, shape index: {}]
  %s2 = inlined_call_operand.vmem [shape: f32[1,2], index: 2, kind: input, shape index: {}]
  %s3 = inlined_call_operand.vmem [shape: f32[2,32], index: 3, kind: input, shape index: {}]
  %s4 = inlined_call_operand.vmem [shape: f32[1,32], index: 4, kind: input, shape index: {}]
  %s5 = inlined_call_operand.vmem [shape: f32[2,32,256], index: 5, kind: output, shape index: {}]
  %s6 = sld [smem:[#allocation0]]
  $region30: #{ca_layer.1} parent=0
    _
  %s8 = ssub.s32 1, %s6
  %s9 = scalar_select 0, %s8, %s6
  // Predicated region
  $region2: #{ca_layer.1} parent=0 // pred_check
    _
  $region3: #{ca_layer.1} parent=0 // pred_check_branch
    %11 = sbr.rel (0) target = $region5
  $region4: #{ca_layer.1} parent=0 // pred_region
    _
  $region5: #{ca_layer.1} parent=0 // pred_fallthru
    _
  // Predicated region
  $region6: #{ca_layer.1} parent=0 // pred_check
    _
  $region7: #{ca_layer.1} parent=0 // pred_check_branch
    %13 = sbr.rel (0) target = $region9
  $region8: #{ca_layer.1} parent=0 // pred_region
    _
  $region9: #{ca_layer.1} parent=0 // pred_fallthru
    _
  // Predicated region
  $region10: #{ca_layer.1} parent=0 // pred_check
    _
  $region11: #{ca_layer.1} parent=0 // pred_check_branch
    %15 = sbr.rel (0) target = $region13
  $region12: #{ca_layer.1} parent=0 // pred_region
    _
  $region13: #{ca_layer.1} parent=0 // pred_fallthru
    _
  // Predicated region
  $region14: #{ca_layer.1} parent=0 // pred_check
    _
  $region15: #{ca_layer.1} parent=0 // pred_check_branch
    %17 = sbr.rel (0) target = $region17
  $region16: #{ca_layer.1} parent=0 // pred_region
    _
  $region17: #{ca_layer.1} parent=0 // pred_fallthru
    _
  // Predicated region
  $region18: #{ca_layer.1} parent=0 // pred_check
    _
  $region19: #{ca_layer.1} parent=0 // pred_check_branch
    %19 = sbr.rel (0) target = $region21
  $region20: #{ca_layer.1} parent=0 // pred_region
    _
  $region21: #{ca_layer.1} parent=0 // pred_fallthru
    _
  %v20 = vld [vmem:[%s0] sm:$0xff]
  %v21 = vld [vmem:[%s0 + $0x8] sm:$0xff]
  %v22 = vld [vmem:[%s0 + $0x10] sm:$0xff]
  %v23 = vld [vmem:[%s0 + $0x18] sm:$0xff]
  %v24 = vld [vmem:[%s0 + $0x20] sm:$0xff]
  %v25 = vld [vmem:[%s0 + $0x28] sm:$0xff]
  %v26 = vld [vmem:[%s0 + $0x30] sm:$0xff]
  %v27 = vld [vmem:[%s0 + $0x38] sm:$0xff]
  %v28 = vld [vmem:[%s0 + $0x40] sm:$0xff]
  %v29 = vld [vmem:[%s0 + $0x48] sm:$0xff]
  %v30 = vld [vmem:[%s0 + $0x50] sm:$0xff]
  %v31 = vld [vmem:[%s0 + $0x58] sm:$0xff]
  %v32 = vld [vmem:[%s0 + $0x60] sm:$0xff]
  %v33 = vld [vmem:[%s0 + $0x68] sm:$0xff]
  %v34 = vld [vmem:[%s0 + $0x70] sm:$0xff]
  %v35 = vld [vmem:[%s0 + $0x78] sm:$0xff]
  %v36 = vadd.f32 %v20, %v21
  %37 = vadd.xlane.f32.xlu0 %v36
  %v38 = vpop.xlane.xlu0 %37
  %v39 = vadd.f32 %v22, %v23
  %40 = vadd.xlane.f32.xlu0 %v39
  %v41 = vpop.xlane.xlu0 %40
  %v42 = vadd.f32 %v24, %v25
  %43 = vadd.xlane.f32.xlu0 %v42
  %v44 = vpop.xlane.xlu0 %43
  %v45 = vadd.f32 %v26, %v27
  %46 = vadd.xlane.f32.xlu0 %v45
  %v47 = vpop.xlane.xlu0 %46
  %v48 = vadd.f32 %v28, %v29
  %49 = vadd.xlane.f32.xlu0 %v48
  %v50 = vpop.xlane.xlu0 %49
  %v51 = vadd.f32 %v30, %v31
  %52 = vadd.xlane.f32.xlu0 %v51
  %v53 = vpop.xlane.xlu0 %52
  %v54 = vadd.f32 %v32, %v33
  %55 = vadd.xlane.f32.xlu0 %v54
  %v56 = vpop.xlane.xlu0 %55
  %v57 = vadd.f32 %v34, %v35
  %58 = vadd.xlane.f32.xlu0 %v57
  %v59 = vpop.xlane.xlu0 %58
  %v60 = vld [vmem:[%s1] sm:$0xff]
  %v61 = vld [vmem:[%s1 + $0x8] sm:$0xff]
  %v62 = vld [vmem:[%s1 + $0x10] sm:$0xff]
  %v63 = vld [vmem:[%s1 + $0x18] sm:$0xff]
  %v64 = vld [vmem:[%s2] sm:$0x1]
  %v66 = vlaneseq
  %v67 = vshrl.u32 %v66, 7
  %v68 = vsub.s32 0, %v67
  %v69 = vrot.slane %v64, %v68
  %v79 = vlaneseq
  %v80 = vand.u32 %v79, 127
  %v81 = vlaneseq
  %v82 = vshrl.u32 %v81, 7
  %v83 = vsub.s32 %v80, %v82
  %v84 = vrot.slane %v38, %v83
  %v85 = vadd.s32 %v80, 4294967288
  %v86 = vlaneseq
  %v87 = vshrl.u32 %v86, 7
  %v88 = vsub.s32 %v85, %v87
  %v89 = vrot.slane %v41, %v88
  %vm90 = vcmask 130112
  %v91 = vsel %vm90, %v89, %v84
  %v92 = vadd.s32 %v80, 4294967280
  %v93 = vlaneseq
  %v94 = vshrl.u32 %v93, 7
  %v95 = vsub.s32 %v92, %v94
  %v96 = vrot.slane %v44, %v95
  %vm97 = vcmask 195712
  %v98 = vsel %vm97, %v96, %v91
  %v99 = vadd.s32 %v80, 4294967272
  %v100 = vlaneseq
  %v101 = vshrl.u32 %v100, 7
  %v102 = vsub.s32 %v99, %v101
  %v103 = vrot.slane %v47, %v102
  %vm104 = vcmask 261312
  %v105 = vsel %vm104, %v103, %v98
  %v106 = vlaneseq
  %v107 = vshrl.u32 %v106, 7
  %v108 = vsub.s32 %v80, %v107
  %v109 = vrot.slane %v50, %v108
  %v110 = vlaneseq
  %v111 = vshrl.u32 %v110, 7
  %v112 = vsub.s32 %v85, %v111
  %v113 = vrot.slane %v53, %v112
  %v114 = vsel %vm90, %v113, %v109
  %v115 = vlaneseq
  %v116 = vshrl.u32 %v115, 7
  %v117 = vsub.s32 %v92, %v116
  %v118 = vrot.slane %v56, %v117
  %v119 = vsel %vm97, %v118, %v114
  %v120 = vlaneseq
  %v121 = vshrl.u32 %v120, 7
  %v122 = vsub.s32 %v99, %v121
  %v123 = vrot.slane %v59, %v122
  %v124 = vsel %vm104, %v123, %v119
  %vm125 = vcmask 1041409
  %v126 = vsel %vm125, %v124, %v105
  %vm127 = vcmask 261120
  %v128 = vsel %vm127, %v126, 0
  %130 = vmatprep.subr.mxu0 0.0
  %131 = vmatpush1.msra.mxu0 %v60
  %132 = vmatprep.subr.mxu0 0.0
  %133 = vmatpush1.msra.mxu0 %v61
  %134 = vmatprep.subr.mxu0 0.0
  %135 = vmatpush1.msra.mxu0 %v62
  %136 = vmatprep.subr.mxu0 0.0
  %137 = vmatpush1.msra.mxu0 %v63
  %138 = vmatprep.subr.mxu0 0.0
  %139 = vmatpush1.msra.mxu0 0.0
  %140 = vmatprep.subr.mxu0 0.0
  %141 = vmatpush1.msra.mxu0 0.0
  %142 = vmatprep.subr.mxu0 0.0
  %143 = vmatpush1.msra.mxu0 0.0
  %144 = vmatprep.subr.mxu0 0.0
  %145 = vmatpush1.msra.mxu0 0.0
  %146 = vmatprep.subr.mxu0 0.0
  %147 = vmatpush1.msra.mxu0 0.0
  %148 = vmatprep.subr.mxu0 0.0
  %149 = vmatpush1.msra.mxu0 0.0
  %150 = vmatprep.subr.mxu0 0.0
  %151 = vmatpush1.msra.mxu0 0.0
  %152 = vmatprep.subr.mxu0 0.0
  %153 = vmatpush1.msra.mxu0 0.0
  %154 = vmatprep.subr.mxu0 0.0
  %155 = vmatpush1.msra.mxu0 0.0
  %156 = vmatprep.subr.mxu0 0.0
  %157 = vmatpush1.msra.mxu0 0.0
  %158 = vmatprep.subr.mxu0 0.0
  %159 = vmatpush1.msra.mxu0 0.0
  %160 = vmatprep.subr.mxu0 0.0
  %161 = vmatpush1.msra.mxu0 0.0
  %162 = vmatprep.subr.mxu0 0.0
  %163 = vmatpush1.msra.mxu0 0.0
  %164 = vmatprep.subr.mxu0 0.0
  %165 = vmatpush1.msra.mxu0 0.0
  %166 = vmatprep.subr.mxu0 0.0
  %167 = vmatpush1.msra.mxu0 0.0
  %168 = vmatprep.subr.mxu0 0.0
  %169 = vmatpush1.msra.mxu0 0.0
  %170 = vmatprep.subr.mxu0 0.0
  %171 = vmatpush1.msra.mxu0 0.0
  %172 = vmatprep.subr.mxu0 0.0
  %173 = vmatpush1.msra.mxu0 0.0
  %174 = vmatprep.subr.mxu0 0.0
  %175 = vmatpush1.msra.mxu0 0.0
  %176 = vmatprep.subr.mxu0 0.0
  %177 = vmatpush1.msra.mxu0 0.0
  %178 = vmatprep.subr.mxu0 0.0
  %179 = vmatpush1.msra.mxu0 0.0
  %180 = vmatprep.subr.mxu0 0.0
  %181 = vmatpush1.msra.mxu0 0.0
  %182 = vmatprep.subr.mxu0 0.0
  %183 = vmatpush1.msra.mxu0 0.0
  %184 = vmatprep.subr.mxu0 0.0
  %185 = vmatpush1.msra.mxu0 0.0
  %186 = vmatprep.subr.mxu0 0.0
  %187 = vmatpush1.msra.mxu0 0.0
  %188 = vmatprep.subr.mxu0 0.0
  %189 = vmatpush1.msra.mxu0 0.0
  %190 = vmatprep.subr.mxu0 0.0
  %191 = vmatpush1.msra.mxu0 0.0
  %192 = vmatprep.subr.mxu0 0.0
  %193 = vmatpush1.msra.mxu0 0.0
  %194 = vmatprep.mubr.f32.mxu0 0.0
  %195 = vmatmul.mubr.f32.gmra.mrb[0].mxu0 %v128
  %v196 = vpop.f32.mrb[0].mxu0
  %v197 = vadd.f32 %v69, %v196
  %v198 = vpop.f32.mrb[0].mxu0
  %199 = vdwg.mxu0
  %v200 = vmax.f32 %v197, 0.0
  %v201 = vld [vmem:[%s3] sm:$0x3]
  %v202 = vld [vmem:[%s4] sm:$0x1]
  %v204 = vlaneseq
  %v205 = vshrl.u32 %v204, 7
  %v206 = vsub.s32 0, %v205
  %v207 = vrot.slane %v202, %v206
  %vm209 = vcmask 15360
  %v211 = vsel %vm209, %v200, 0
  %vm213 = vcmask 1041408
  %v215 = vsel %vm213, %v201, 0
  %217 = vmatprep.subr.mxu0 0.0
  %218 = vmatpush1.msra.mxu0 %v215
  %219 = vmatprep.subr.mxu0 0.0
  %220 = vmatpush1.msra.mxu0 0.0
  %221 = vmatprep.subr.mxu0 0.0
  %222 = vmatpush1.msra.mxu0 0.0
  %223 = vmatprep.subr.mxu0 0.0
  %224 = vmatpush1.msra.mxu0 0.0
  %225 = vmatprep.subr.mxu0 0.0
  %226 = vmatpush1.msra.mxu0 0.0
  %227 = vmatprep.subr.mxu0 0.0
  %228 = vmatpush1.msra.mxu0 0.0
  %229 = vmatprep.subr.mxu0 0.0
  %230 = vmatpush1.msra.mxu0 0.0
  %231 = vmatprep.subr.mxu0 0.0
  %232 = vmatpush1.msra.mxu0 0.0
  %233 = vmatprep.subr.mxu0 0.0
  %234 = vmatpush1.msra.mxu0 0.0
  %235 = vmatprep.subr.mxu0 0.0
  %236 = vmatpush1.msra.mxu0 0.0
  %237 = vmatprep.subr.mxu0 0.0
  %238 = vmatpush1.msra.mxu0 0.0
  %239 = vmatprep.subr.mxu0 0.0
  %240 = vmatpush1.msra.mxu0 0.0
  %241 = vmatprep.subr.mxu0 0.0
  %242 = vmatpush1.msra.mxu0 0.0
  %243 = vmatprep.subr.mxu0 0.0
  %244 = vmatpush1.msra.mxu0 0.0
  %245 = vmatprep.subr.mxu0 0.0
  %246 = vmatpush1.msra.mxu0 0.0
  %247 = vmatprep.subr.mxu0 0.0
  %248 = vmatpush1.msra.mxu0 0.0
  %249 = vmatprep.subr.mxu0 0.0
  %250 = vmatpush1.msra.mxu0 0.0
  %251 = vmatprep.subr.mxu0 0.0
  %252 = vmatpush1.msra.mxu0 0.0
  %253 = vmatprep.subr.mxu0 0.0
  %254 = vmatpush1.msra.mxu0 0.0
  %255 = vmatprep.subr.mxu0 0.0
  %256 = vmatpush1.msra.mxu0 0.0
  %257 = vmatprep.subr.mxu0 0.0
  %258 = vmatpush1.msra.mxu0 0.0
  %259 = vmatprep.subr.mxu0 0.0
  %260 = vmatpush1.msra.mxu0 0.0
  %261 = vmatprep.subr.mxu0 0.0
  %262 = vmatpush1.msra.mxu0 0.0
  %263 = vmatprep.subr.mxu0 0.0
  %264 = vmatpush1.msra.mxu0 0.0
  %265 = vmatprep.subr.mxu0 0.0
  %266 = vmatpush1.msra.mxu0 0.0
  %267 = vmatprep.subr.mxu0 0.0
  %268 = vmatpush1.msra.mxu0 0.0
  %269 = vmatprep.subr.mxu0 0.0
  %270 = vmatpush1.msra.mxu0 0.0
  %271 = vmatprep.subr.mxu0 0.0
  %272 = vmatpush1.msra.mxu0 0.0
  %273 = vmatprep.subr.mxu0 0.0
  %274 = vmatpush1.msra.mxu0 0.0
  %275 = vmatprep.subr.mxu0 0.0
  %276 = vmatpush1.msra.mxu0 0.0
  %277 = vmatprep.subr.mxu0 0.0
  %278 = vmatpush1.msra.mxu0 0.0
  %279 = vmatprep.subr.mxu0 0.0
  %280 = vmatpush1.msra.mxu0 0.0
  %281 = vmatprep.mubr.f32.mxu0 0.0
  %282 = vmatmul.mubr.f32.gmra.mrb[0].mxu0 %v211
  %v283 = vpop.f32.mrb[0].mxu0
  %v284 = vadd.f32 %v207, %v283
  %v285 = vpop.f32.mrb[0].mxu0
  %286 = vdwg.mxu0
  %v287 = vxor.u32 %v284, 2147483648
  %v288 = vmul.f32 %v287, 1.442695
  %v289 = vpow.pop %v288
  %v290 = vadd.f32 %v289, 1.0
  %v291 = vrcp.pop %v290
  %v292 = vmul.f32 1.0, %v291
  %v293 = vlaneseq
  %v294 = vshrl.u32 %v293, 7
  %v295 = vsub.s32 0, %v294
  %v296 = vrot.slane %v292, %v295
  %298 = vbcast.lane.b32.xlu0 %v296, 256
  %v299 = vpop.permute.xlu0 %298
  %s301 = sor.u32 256, 8
  %302 = vbcast.lane.b32.xlu0 %v296, %s301
  %v303 = vpop.permute.xlu0 %302
  %s305 = sor.u32 256, 16
  %306 = vbcast.lane.b32.xlu0 %v296, %s305
  %v307 = vpop.permute.xlu0 %306
  %s309 = sor.u32 256, 24
  %310 = vbcast.lane.b32.xlu0 %v296, %s309
  %v311 = vpop.permute.xlu0 %310
  %v312 = vlaneseq
  %v313 = vshrl.u32 %v312, 7
  %v314 = vsub.s32 1, %v313
  %v315 = vrot.slane %v292, %v314
  %317 = vbcast.lane.b32.xlu0 %v315, 256
  %v318 = vpop.permute.xlu0 %317
  %s320 = sor.u32 256, 8
  %321 = vbcast.lane.b32.xlu0 %v315, %s320
  %v322 = vpop.permute.xlu0 %321
  %s324 = sor.u32 256, 16
  %325 = vbcast.lane.b32.xlu0 %v315, %s324
  %v326 = vpop.permute.xlu0 %325
  %s328 = sor.u32 256, 24
  %329 = vbcast.lane.b32.xlu0 %v315, %s328
  %v330 = vpop.permute.xlu0 %329
  %v331 = vmul.f32 %v20, %v299
  %v332 = vmul.f32 %v21, %v299
  %v333 = vmul.f32 %v22, %v303
  %v334 = vmul.f32 %v23, %v303
  %v335 = vmul.f32 %v24, %v307
  %v336 = vmul.f32 %v25, %v307
  %v337 = vmul.f32 %v26, %v311
  %v338 = vmul.f32 %v27, %v311
  %v339 = vmul.f32 %v28, %v318
  %v340 = vmul.f32 %v29, %v318
  %v341 = vmul.f32 %v30, %v322
  %v342 = vmul.f32 %v31, %v322
  %v343 = vmul.f32 %v32, %v326
  %v344 = vmul.f32 %v33, %v326
  %v345 = vmul.f32 %v34, %v330
  %v346 = vmul.f32 %v35, %v330
  %347 = vst [vmem:[%s5] sm:$0xff] %v331
  %348 = vst [vmem:[%s5 + $0x8] sm:$0xff] %v332
  %349 = vst [vmem:[%s5 + $0x10] sm:$0xff] %v333
  %350 = vst [vmem:[%s5 + $0x18] sm:$0xff] %v334
  %351 = vst [vmem:[%s5 + $0x20] sm:$0xff] %v335
  %352 = vst [vmem:[%s5 + $0x28] sm:$0xff] %v336
  %353 = vst [vmem:[%s5 + $0x30] sm:$0xff] %v337
  %354 = vst [vmem:[%s5 + $0x38] sm:$0xff] %v338
  %355 = vst [vmem:[%s5 + $0x40] sm:$0xff] %v339
  %356 = vst [vmem:[%s5 + $0x48] sm:$0xff] %v340
  %357 = vst [vmem:[%s5 + $0x50] sm:$0xff] %v341
  %358 = vst [vmem:[%s5 + $0x58] sm:$0xff] %v342
  %359 = vst [vmem:[%s5 + $0x60] sm:$0xff] %v343
  %360 = vst [vmem:[%s5 + $0x68] sm:$0xff] %v344
  %361 = vst [vmem:[%s5 + $0x70] sm:$0xff] %v345
  %362 = vst [vmem:[%s5 + $0x78] sm:$0xff] %v346
  // Predicated region
  $region22: #{ca_layer.1} parent=0 // pred_check
    _
  $region23: #{ca_layer.1} parent=0 // pred_check_branch
    %364 = sbr.rel (0) target = $region25
  $region24: #{ca_layer.1} parent=0 // pred_region
    _
  $region25: #{ca_layer.1} parent=0 // pred_fallthru
    _
  // Predicated region
  $region26: #{ca_layer.1} parent=0 // pred_check
    _
  $region27: #{ca_layer.1} parent=0 // pred_check_branch
    %366 = sbr.rel (0) target = $region29
  $region28: #{ca_layer.1} parent=0 // pred_region
    _
  $region29: #{ca_layer.1} parent=0 // pred_fallthru
    _

</llo_original>
